<compile_context>
chip_gen: v6e
topology: v6e:2x2x1
jax: 0.10.0
libtpu: 0.0.40
codegen_flags: <defaults>
</compile_context>

<pallas_src>
import functools

import jax
import jax.numpy as jnp
from jax.experimental import pallas as pl
from jax.experimental.pallas import tpu as pltpu


# ------------------------------ Pallas kernel --------------------------------
def _bilstm_kernel(gxf_ref, gxb_ref, whf_ref, whb_ref,
                   out_f_ref, out_b_ref,
                   hf, cf, hb, cb, *, hidden, chunk):
    """One grid step processes a chunk of `chunk` timesteps for both directions.

    gxf_ref / gxb_ref : (T, B, 4H) f32  precomputed x-projections (+bias)
                        (backward block is the time-reversed chunk via index_map)
    whf_ref / whb_ref : (H, 4H)   bf16  recurrent weights (transposed)
    out_f_ref/out_b_ref: (T, B, H) f32  per-direction hidden outputs
    hf/cf/hb/cb       : (B, H)    f32  VMEM scratch state, persistent across grid
    """
    c_idx = pl.program_id(0)

    @pl.when(c_idx == 0)
    def _():
        hf[...] = jnp.zeros_like(hf)
        cf[...] = jnp.zeros_like(cf)
        hb[...] = jnp.zeros_like(hb)
        cb[...] = jnp.zeros_like(cb)

    H = hidden
    T = chunk

    # Load the (small) recurrent weights once per chunk.
    whf = whf_ref[...]
    whb = whb_ref[...]

    def cell(gx, h, c, whhT):
        # gx already contains x_t @ W_ih^T + b_ih + b_hh  (f32).
        # Recurrent matmul in bf16 on the MXU, accumulated in f32.
        gates = gx + jnp.dot(h.astype(whhT.dtype), whhT,
                             preferred_element_type=jnp.float32)
        # PyTorch gate order: i, f, g, o.
        # NOTE: for production sizes make H a multiple of 128 so these slices
        # are lane-aligned (free views instead of XLU relayouts).
        i = jax.nn.sigmoid(gates[:, 0 * H:1 * H])
        f = jax.nn.sigmoid(gates[:, 1 * H:2 * H])
        g = jnp.tanh(gates[:, 2 * H:3 * H])
        o = jax.nn.sigmoid(gates[:, 3 * H:4 * H])
        c_new = f * c + i * g
        h_new = o * jnp.tanh(c_new)
        return h_new, c_new

    def body(s, carry):
        h_f, c_f, h_b, c_b = carry
        # ---- forward: row s of this chunk ----
        h_f, c_f = cell(gxf_ref[s], h_f, c_f, whf)
        out_f_ref[s] = h_f.astype(out_f_ref.dtype)
        # ---- backward: row T-1-s of its (time-reversed) chunk ----
        sb = T - 1 - s
        h_b, c_b = cell(gxb_ref[sb], h_b, c_b, whb)
        out_b_ref[sb] = h_b.astype(out_b_ref.dtype)
        return h_f, c_f, h_b, c_b

    h_f, c_f, h_b, c_b = jax.lax.fori_loop(
        0, T, body, (hf[...], cf[...], hb[...], cb[...]))

    # Spill state to VMEM scratch only at chunk boundaries.
    hf[...] = h_f
    cf[...] = c_f
    hb[...] = h_b
    cb[...] = c_b


# --------------------------------- wrapper -----------------------------------
def _pick_chunk(L, max_chunk):
    """Largest divisor of L that is <= max_chunk (keeps reversal exact)."""
    T = min(L, max_chunk)
    while L % T != 0:
        T -= 1
    return T


def lstm_encoder_forward(x_bld, params, lengths=None, *,
                         max_chunk=128, matmul_dtype=jnp.bfloat16):
    """Bidirectional single-layer LSTM encoder.

    Args:
        x_bld: (B, L, din) float32
        params: dict of LSTM parameters (PyTorch shapes)
        lengths: unsupported (pack_padded_sequence path)
    Returns:
        (B, L, 2*H) float32
    """
    assert lengths is None  # TODO(synk): variable-length (packed) sequences unsupported
    B, L, din = x_bld.shape
    H = params["w_hh_f"].shape[1]

    x_lbd = jnp.transpose(x_bld, (1, 0, 2))            # time-major (L, B, din)
    x_mm = x_lbd.astype(matmul_dtype)

    def input_proj(wih, b_ih, b_hh):
        # One big GEMM over all timesteps: (L*B, din) @ (din, 4H), f32 accumulate.
        w = jnp.transpose(wih).astype(matmul_dtype)     # (din, 4H)
        gx = jnp.einsum("lbd,dg->lbg", x_mm, w,
                        preferred_element_type=jnp.float32)
        return gx + (b_ih + b_hh).astype(jnp.float32)[None, None, :]

    gx_f = input_proj(params["w_ih_f"], params["b_ih_f"], params["b_hh_f"])  # (L,B,4H)
    gx_b = input_proj(params["w_ih_b"], params["b_ih_b"], params["b_hh_b"])  # (L,B,4H)

    whhT_f = jnp.transpose(params["w_hh_f"]).astype(matmul_dtype)   # (H, 4H) bf16
    whhT_b = jnp.transpose(params["w_hh_b"]).astype(matmul_dtype)   # (H, 4H) bf16

    T = _pick_chunk(L, max_chunk)
    Lc = L // T

    in_specs = [
        pl.BlockSpec((T, B, 4 * H), lambda c: (c, 0, 0)),            # gx fwd
        pl.BlockSpec((T, B, 4 * H), lambda c: (Lc - 1 - c, 0, 0)),   # gx bwd (reversed chunks)
        pl.BlockSpec((H, 4 * H), lambda c: (0, 0)),                  # W_hh fwd
        pl.BlockSpec((H, 4 * H), lambda c: (0, 0)),                  # W_hh bwd
    ]
    out_specs = [
        pl.BlockSpec((T, B, H), lambda c: (c, 0, 0)),                # fwd hidden
        pl.BlockSpec((T, B, H), lambda c: (Lc - 1 - c, 0, 0)),       # bwd hidden
    ]
    scratch_shapes = [pltpu.VMEM((B, H), jnp.float32) for _ in range(4)]

    out_f, out_b = pl.pallas_call(
        functools.partial(_bilstm_kernel, hidden=H, chunk=T),
        out_shape=(jax.ShapeDtypeStruct((L, B, H), x_bld.dtype),
                   jax.ShapeDtypeStruct((L, B, H), x_bld.dtype)),
        grid_spec=pltpu.PrefetchScalarGridSpec(
            num_scalar_prefetch=0,
            grid=(Lc,),
            in_specs=in_specs,
            out_specs=out_specs,
            scratch_shapes=scratch_shapes),
        compiler_params=pltpu.CompilerParams(
            dimension_semantics=("arbitrary",),          # sequential recurrence
            vmem_limit_bytes=48 * 1024 * 1024),
    )(gx_f, gx_b, whhT_f, whhT_b)

    out = jnp.concatenate([out_f, out_b], axis=-1)       # (L, B, 2H)
    return jnp.transpose(out, (1, 0, 2))                 # (B, L, 2H)


# ----------------------- parameter init (xavier_normal_) ---------------------
def _xavier_normal(key, shape):
    fan_out, fan_in = shape        # torch 2D convention: (out_features, in_features)
    std = (2.0 / (fan_in + fan_out)) ** 0.5
    return std * jax.random.normal(key, shape, dtype=jnp.float32)


def init_lstm_encoder_params(key, din, dout):
    ks = jax.random.split(key, 4)
    H = dout
    return {
        "w_ih_f": _xavier_normal(ks[0], (4 * H, din)),
        "w_hh_f": _xavier_normal(ks[1], (4 * H, H)),
        "b_ih_f": jnp.zeros((4 * H,), jnp.float32),
        "b_hh_f": jnp.zeros((4 * H,), jnp.float32),
        "w_ih_b": _xavier_normal(ks[2], (4 * H, din)),
        "w_hh_b": _xavier_normal(ks[3], (4 * H, H)),
        "b_ih_b": jnp.zeros((4 * H,), jnp.float32),
        "b_hh_b": jnp.zeros((4 * H,), jnp.float32),
    }


# ----------------------------- pure-JAX reference ----------------------------
def _lstm_ref_dir(x, wih, whh, b, reverse):
    B, L, _ = x.shape
    H = whh.shape[1]

    def step(carry, x_t):
        h, c = carry
        gates = x_t @ wih.T + h @ whh.T + b
        i, f, g, o = jnp.split(gates, 4, axis=-1)
        i, f, o = jax.nn.sigmoid(i), jax.nn.sigmoid(f), jax.nn.sigmoid(o)
        g = jnp.tanh(g)
        c = f * c + i * g
        h = o * jnp.tanh(c)
        return (h, c), h

    xs = jnp.transpose(x, (1, 0, 2))
    if reverse:
        xs = xs[::-1]
    _, hs = jax.lax.scan(step, (jnp.zeros((B, H)), jnp.zeros((B, H))), xs)
    if reverse:
        hs = hs[::-1]
    return jnp.transpose(hs, (1, 0, 2))


def lstm_encoder_ref(x, p):
    fwd = _lstm_ref_dir(x, p["w_ih_f"], p["w_hh_f"], p["b_ih_f"] + p["b_hh_f"], False)
    bwd = _lstm_ref_dir(x, p["w_ih_b"], p["w_hh_b"], p["b_ih_b"] + p["b_hh_b"], True)
    return jnp.concatenate([fwd, bwd], axis=-1)


# ------------------------------------ main -----------------------------------
if __name__ == "__main__":
    B, L, din, dout = 2, 8, 16, 32

    key = jax.random.PRNGKey(0)
    k_x, k_p = jax.random.split(key)
    x = jax.random.normal(k_x, (B, L, din), dtype=jnp.float32)
    params = init_lstm_encoder_params(k_p, din, dout)

    out = lstm_encoder_forward(x, params)          # (B, L, 2*dout)
    out = jax.block_until_ready(out)

    ref = jax.block_until_ready(lstm_encoder_ref(x, params))
    assert out.shape == (B, L, 2 * dout), out.shape
    # bf16 matmuls vs. f32 reference -> loosened tolerance (per perf review).
    err = float(jnp.max(jnp.abs(out - ref)))
    assert err < 3e-2, err

    print("KERNEL_OK")
</pallas_src>

<mosaic_0001>
module attributes {stable_mosaic.version = 11 : i64} {
  func.func @_bilstm_kernel(%arg0: i32, %arg1: memref<8x2x128xf32, #tpu.memory_space<vmem>>, %arg2: memref<8x2x128xf32, #tpu.memory_space<vmem>>, %arg3: memref<32x128xbf16, #tpu.memory_space<vmem>>, %arg4: memref<32x128xbf16, #tpu.memory_space<vmem>>, %arg5: memref<8x2x32xf32, #tpu.memory_space<vmem>>, %arg6: memref<8x2x32xf32, #tpu.memory_space<vmem>>, %arg7: memref<2x32xf32, #tpu.memory_space<vmem>>, %arg8: memref<2x32xf32, #tpu.memory_space<vmem>>, %arg9: memref<2x32xf32, #tpu.memory_space<vmem>>, %arg10: memref<2x32xf32, #tpu.memory_space<vmem>>) attributes {dimension_semantics = [#tpu.dimension_semantics<arbitrary>], iteration_bounds = array<i64: 1>, scalar_prefetch = 0 : i64, scratch_operands = 4 : i64, tpu.core_type = #tpu.core_type<tc>, window_params = [{transform_indices = @transform_0, window_bounds = array<i64: 8, 2, 128>}, {transform_indices = @transform_1, window_bounds = array<i64: 8, 2, 128>}, {pipeline_mode = #tpu.pipeline_mode<synchronous>, transform_indices = @transform_2, window_bounds = array<i64: 32, 128>}, {pipeline_mode = #tpu.pipeline_mode<synchronous>, transform_indices = @transform_3, window_bounds = array<i64: 32, 128>}, {transform_indices = @transform_4, window_bounds = array<i64: 8, 2, 32>}, {transform_indices = @transform_5, window_bounds = array<i64: 8, 2, 32>}]} {
    %c0_i32 = arith.constant 0 : i32
    %0 = arith.cmpi eq, %arg0, %c0_i32 : i32
    %1 = arith.extui %0 : i1 to i32
    %c0_i32_0 = arith.constant 0 : i32
    %2 = arith.cmpi ne, %1, %c0_i32_0 : i32
    scf.if %2 {
      %cst = arith.constant 0.000000e+00 : f32
      %15 = vector.broadcast %cst : f32 to vector<2x32xf32>
      %c0_22 = arith.constant 0 : index
      %c0_23 = arith.constant 0 : index
      %16 = vector.load %arg7[%c0_22, %c0_23] : memref<2x32xf32, #tpu.memory_space<vmem>>, vector<2x32xf32>
      tpu.vector_store %arg7[%c0_22, %c0_23], %15 {strides = array<i32>} : memref<2x32xf32, #tpu.memory_space<vmem>>, vector<2x32xf32>,
      %cst_24 = arith.constant 0.000000e+00 : f32
      %17 = vector.broadcast %cst_24 : f32 to vector<2x32xf32>
      %c0_25 = arith.constant 0 : index
      %c0_26 = arith.constant 0 : index
      %18 = vector.load %arg8[%c0_25, %c0_26] : memref<2x32xf32, #tpu.memory_space<vmem>>, vector<2x32xf32>
      tpu.vector_store %arg8[%c0_25, %c0_26], %17 {strides = array<i32>} : memref<2x32xf32, #tpu.memory_space<vmem>>, vector<2x32xf32>,
      %cst_27 = arith.constant 0.000000e+00 : f32
      %19 = vector.broadcast %cst_27 : f32 to vector<2x32xf32>
      %c0_28 = arith.constant 0 : index
      %c0_29 = arith.constant 0 : index
      %20 = vector.load %arg9[%c0_28, %c0_29] : memref<2x32xf32, #tpu.memory_space<vmem>>, vector<2x32xf32>
      tpu.vector_store %arg9[%c0_28, %c0_29], %19 {strides = array<i32>} : memref<2x32xf32, #tpu.memory_space<vmem>>, vector<2x32xf32>,
      %cst_30 = arith.constant 0.000000e+00 : f32
      %21 = vector.broadcast %cst_30 : f32 to vector<2x32xf32>
      %c0_31 = arith.constant 0 : index
      %c0_32 = arith.constant 0 : index
      %22 = vector.load %arg10[%c0_31, %c0_32] : memref<2x32xf32, #tpu.memory_space<vmem>>, vector<2x32xf32>
      tpu.vector_store %arg10[%c0_31, %c0_32], %21 {strides = array<i32>} : memref<2x32xf32, #tpu.memory_space<vmem>>, vector<2x32xf32>,
    } else {
    }
    %c0 = arith.constant 0 : index
    %c0_1 = arith.constant 0 : index
    %3 = vector.load %arg3[%c0, %c0_1] : memref<32x128xbf16, #tpu.memory_space<vmem>>, vector<32x128xbf16>
    %c0_2 = arith.constant 0 : index
    %c0_3 = arith.constant 0 : index
    %4 = vector.load %arg4[%c0_2, %c0_3] : memref<32x128xbf16, #tpu.memory_space<vmem>>, vector<32x128xbf16>
    %c0_4 = arith.constant 0 : index
    %c0_5 = arith.constant 0 : index
    %5 = vector.load %arg7[%c0_4, %c0_5] : memref<2x32xf32, #tpu.memory_space<vmem>>, vector<2x32xf32>
    %c0_6 = arith.constant 0 : index
    %c0_7 = arith.constant 0 : index
    %6 = vector.load %arg8[%c0_6, %c0_7] : memref<2x32xf32, #tpu.memory_space<vmem>>, vector<2x32xf32>
    %c0_8 = arith.constant 0 : index
    %c0_9 = arith.constant 0 : index
    %7 = vector.load %arg9[%c0_8, %c0_9] : memref<2x32xf32, #tpu.memory_space<vmem>>, vector<2x32xf32>
    %c0_10 = arith.constant 0 : index
    %c0_11 = arith.constant 0 : index
    %8 = vector.load %arg10[%c0_10, %c0_11] : memref<2x32xf32, #tpu.memory_space<vmem>>, vector<2x32xf32>
    %c0_i32_12 = arith.constant 0 : i32
    %c8_i32 = arith.constant 8 : i32
    %9 = arith.addi %c0_i32_12, %c8_i32 : i32
    %c1_i32 = arith.constant 1 : i32
    %10:4 = scf.for %arg11 = %c0_i32_12 to %9 step %c1_i32 iter_args(%arg12 = %5, %arg13 = %6, %arg14 = %7, %arg15 = %8) -> (vector<2x32xf32>, vector<2x32xf32>, vector<2x32xf32>, vector<2x32xf32>)  : i32 {
      %15 = arith.index_cast %arg11 : i32 to index
      %c0_22 = arith.constant 0 : index
      %c0_23 = arith.constant 0 : index
      %16 = vector.load %arg1[%15, %c0_22, %c0_23] : memref<8x2x128xf32, #tpu.memory_space<vmem>>, vector<1x2x128xf32>
      %17 = vector.shape_cast %16 : vector<1x2x128xf32> to vector<2x128xf32>
      %18 = arith.truncf %arg12 : vector<2x32xf32> to vector<2x32xbf16>
      %cst = arith.constant dense<0.000000e+00> : vector<2x128xf32>
      %19 = tpu.matmul %18, %3, %cst {dimension_numbers = #tpu.dot_dimension_numbers<[1], [0], [0], [1], [0, 0, 1, 1], [], []>} : vector<2x32xbf16>, vector<32x128xbf16>, vector<2x128xf32> -> vector<2x128xf32>
      %20 = arith.addf %17, %19 : vector<2x128xf32>
      %21 = vector.extract_strided_slice %20 {offsets = [0, 0], sizes = [2, 32], strides = [1, 1]} : vector<2x128xf32> to vector<2x32xf32>
      %22 = arith.negf %21 : vector<2x32xf32>
      %23 = math.exp %22 : vector<2x32xf32>
      %cst_24 = arith.constant 1.000000e+00 : f32
      %24 = vector.broadcast %cst_24 : f32 to vector<2x32xf32>
      %25 = arith.addf %24, %23 : vector<2x32xf32>
      %26 = arith.divf %24, %25 : vector<2x32xf32>
      %27 = vector.extract_strided_slice %20 {offsets = [0, 32], sizes = [2, 32], strides = [1, 1]} : vector<2x128xf32> to vector<2x32xf32>
      %28 = arith.negf %27 : vector<2x32xf32>
      %29 = math.exp %28 : vector<2x32xf32>
      %cst_25 = arith.constant 1.000000e+00 : f32
      %30 = vector.broadcast %cst_25 : f32 to vector<2x32xf32>
      %31 = arith.addf %30, %29 : vector<2x32xf32>
      %32 = arith.divf %30, %31 : vector<2x32xf32>
      %33 = vector.extract_strided_slice %20 {offsets = [0, 64], sizes = [2, 32], strides = [1, 1]} : vector<2x128xf32> to vector<2x32xf32>
      %34 = math.tanh %33 : vector<2x32xf32>
      %35 = vector.extract_strided_slice %20 {offsets = [0, 96], sizes = [2, 32], strides = [1, 1]} : vector<2x128xf32> to vector<2x32xf32>
      %36 = arith.negf %35 : vector<2x32xf32>
      %37 = math.exp %36 : vector<2x32xf32>
      %cst_26 = arith.constant 1.000000e+00 : f32
      %38 = vector.broadcast %cst_26 : f32 to vector<2x32xf32>
      %39 = arith.addf %38, %37 : vector<2x32xf32>
      %40 = arith.divf %38, %39 : vector<2x32xf32>
      %41 = arith.mulf %32, %arg13 : vector<2x32xf32>
      %42 = arith.mulf %26, %34 : vector<2x32xf32>
      %43 = arith.addf %41, %42 : vector<2x32xf32>
      %44 = math.tanh %43 : vector<2x32xf32>
      %45 = arith.mulf %40, %44 : vector<2x32xf32>
      %46 = arith.index_cast %arg11 : i32 to index
      %c0_27 = arith.constant 0 : index
      %c0_28 = arith.constant 0 : index
      %47 = vector.load %arg5[%46, %c0_27, %c0_28] : memref<8x2x32xf32, #tpu.memory_space<vmem>>, vector<1x2x32xf32>
      %48 = vector.shape_cast %47 : vector<1x2x32xf32> to vector<2x32xf32>
      %49 = vector.shape_cast %45 : vector<2x32xf32> to vector<1x2x32xf32>
      tpu.vector_store %arg5[%46, %c0_27, %c0_28], %49 {strides = array<i32>} : memref<8x2x32xf32, #tpu.memory_space<vmem>>, vector<1x2x32xf32>,
      %c7_i32 = arith.constant 7 : i32
      %50 = arith.subi %c7_i32, %arg11 : i32
      %51 = arith.index_cast %50 : i32 to index
      %c0_29 = arith.constant 0 : index
      %c0_30 = arith.constant 0 : index
      %52 = vector.load %arg2[%51, %c0_29, %c0_30] : memref<8x2x128xf32, #tpu.memory_space<vmem>>, vector<1x2x128xf32>
      %53 = vector.shape_cast %52 : vector<1x2x128xf32> to vector<2x128xf32>
      %54 = arith.truncf %arg14 : vector<2x32xf32> to vector<2x32xbf16>
      %cst_31 = arith.constant dense<0.000000e+00> : vector<2x128xf32>
      %55 = tpu.matmul %54, %4, %cst_31 {dimension_numbers = #tpu.dot_dimension_numbers<[1], [0], [0], [1], [0, 0, 1, 1], [], []>} : vector<2x32xbf16>, vector<32x128xbf16>, vector<2x128xf32> -> vector<2x128xf32>
      %56 = arith.addf %53, %55 : vector<2x128xf32>
      %57 = vector.extract_strided_slice %56 {offsets = [0, 0], sizes = [2, 32], strides = [1, 1]} : vector<2x128xf32> to vector<2x32xf32>
      %58 = arith.negf %57 : vector<2x32xf32>
      %59 = math.exp %58 : vector<2x32xf32>
      %cst_32 = arith.constant 1.000000e+00 : f32
      %60 = vector.broadcast %cst_32 : f32 to vector<2x32xf32>
      %61 = arith.addf %60, %59 : vector<2x32xf32>
      %62 = arith.divf %60, %61 : vector<2x32xf32>
      %63 = vector.extract_strided_slice %56 {offsets = [0, 32], sizes = [2, 32], strides = [1, 1]} : vector<2x128xf32> to vector<2x32xf32>
      %64 = arith.negf %63 : vector<2x32xf32>
      %65 = math.exp %64 : vector<2x32xf32>
      %cst_33 = arith.constant 1.000000e+00 : f32
      %66 = vector.broadcast %cst_33 : f32 to vector<2x32xf32>
      %67 = arith.addf %66, %65 : vector<2x32xf32>
      %68 = arith.divf %66, %67 : vector<2x32xf32>
      %69 = vector.extract_strided_slice %56 {offsets = [0, 64], sizes = [2, 32], strides = [1, 1]} : vector<2x128xf32> to vector<2x32xf32>
      %70 = math.tanh %69 : vector<2x32xf32>
      %71 = vector.extract_strided_slice %56 {offsets = [0, 96], sizes = [2, 32], strides = [1, 1]} : vector<2x128xf32> to vector<2x32xf32>
      %72 = arith.negf %71 : vector<2x32xf32>
      %73 = math.exp %72 : vector<2x32xf32>
      %cst_34 = arith.constant 1.000000e+00 : f32
      %74 = vector.broadcast %cst_34 : f32 to vector<2x32xf32>
      %75 = arith.addf %74, %73 : vector<2x32xf32>
      %76 = arith.divf %74, %75 : vector<2x32xf32>
      %77 = arith.mulf %68, %arg15 : vector<2x32xf32>
      %78 = arith.mulf %62, %70 : vector<2x32xf32>
      %79 = arith.addf %77, %78 : vector<2x32xf32>
      %80 = math.tanh %79 : vector<2x32xf32>
      %81 = arith.mulf %76, %80 : vector<2x32xf32>
      %82 = arith.index_cast %50 : i32 to index
      %c0_35 = arith.constant 0 : index
      %c0_36 = arith.constant 0 : index
      %83 = vector.load %arg6[%82, %c0_35, %c0_36] : memref<8x2x32xf32, #tpu.memory_space<vmem>>, vector<1x2x32xf32>
      %84 = vector.shape_cast %83 : vector<1x2x32xf32> to vector<2x32xf32>
      %85 = vector.shape_cast %81 : vector<2x32xf32> to vector<1x2x32xf32>
      tpu.vector_store %arg6[%82, %c0_35, %c0_36], %85 {strides = array<i32>} : memref<8x2x32xf32, #tpu.memory_space<vmem>>, vector<1x2x32xf32>,
      scf.yield %45, %43, %81, %79 : vector<2x32xf32>, vector<2x32xf32>, vector<2x32xf32>, vector<2x32xf32>
    }
    %c8_i32_13 = arith.constant 8 : i32
    %c0_14 = arith.constant 0 : index
    %c0_15 = arith.constant 0 : index
    %11 = vector.load %arg7[%c0_14, %c0_15] : memref<2x32xf32, #tpu.memory_space<vmem>>, vector<2x32xf32>
    tpu.vector_store %arg7[%c0_14, %c0_15], %10#0 {strides = array<i32>} : memref<2x32xf32, #tpu.memory_space<vmem>>, vector<2x32xf32>,
    %c0_16 = arith.constant 0 : index
    %c0_17 = arith.constant 0 : index
    %12 = vector.load %arg8[%c0_16, %c0_17] : memref<2x32xf32, #tpu.memory_space<vmem>>, vector<2x32xf32>
    tpu.vector_store %arg8[%c0_16, %c0_17], %10#1 {strides = array<i32>} : memref<2x32xf32, #tpu.memory_space<vmem>>, vector<2x32xf32>,
    %c0_18 = arith.constant 0 : index
    %c0_19 = arith.constant 0 : index
    %13 = vector.load %arg9[%c0_18, %c0_19] : memref<2x32xf32, #tpu.memory_space<vmem>>, vector<2x32xf32>
    tpu.vector_store %arg9[%c0_18, %c0_19], %10#2 {strides = array<i32>} : memref<2x32xf32, #tpu.memory_space<vmem>>, vector<2x32xf32>,
    %c0_20 = arith.constant 0 : index
    %c0_21 = arith.constant 0 : index
    %14 = vector.load %arg10[%c0_20, %c0_21] : memref<2x32xf32, #tpu.memory_space<vmem>>, vector<2x32xf32>
    tpu.vector_store %arg10[%c0_20, %c0_21], %10#3 {strides = array<i32>} : memref<2x32xf32, #tpu.memory_space<vmem>>, vector<2x32xf32>,
    return
  }
  func.func @transform_0(%arg0: i32) -> (i32, i32, i32) {
    %c0_i32 = arith.constant 0 : i32
    %c0_i32_0 = arith.constant 0 : i32
    %c0_i32_1 = arith.constant 0 : i32
    return %arg0, %c0_i32, %c0_i32_0 : i32, i32, i32
  }
  func.func @transform_1(%arg0: i32) -> (i32, i32, i32) {
    %c0_i32 = arith.constant 0 : i32
    %0 = arith.subi %c0_i32, %arg0 : i32
    %c0_i32_0 = arith.constant 0 : i32
    %c0_i32_1 = arith.constant 0 : i32
    %c0_i32_2 = arith.constant 0 : i32
    return %0, %c0_i32_0, %c0_i32_1 : i32, i32, i32
  }
  func.func @transform_2(%arg0: i32) -> (i32, i32) {
    %c0_i32 = arith.constant 0 : i32
    %c0_i32_0 = arith.constant 0 : i32
    %c0_i32_1 = arith.constant 0 : i32
    return %c0_i32, %c0_i32_0 : i32, i32
  }
  func.func @transform_3(%arg0: i32) -> (i32, i32) {
    %c0_i32 = arith.constant 0 : i32
    %c0_i32_0 = arith.constant 0 : i32
    %c0_i32_1 = arith.constant 0 : i32
    return %c0_i32, %c0_i32_0 : i32, i32
  }
  func.func @transform_4(%arg0: i32) -> (i32, i32, i32) {
    %c0_i32 = arith.constant 0 : i32
    %c0_i32_0 = arith.constant 0 : i32
    %c0_i32_1 = arith.constant 0 : i32
    return %arg0, %c0_i32, %c0_i32_0 : i32, i32, i32
  }
  func.func @transform_5(%arg0: i32) -> (i32, i32, i32) {
    %c0_i32 = arith.constant 0 : i32
    %0 = arith.subi %c0_i32, %arg0 : i32
    %c0_i32_0 = arith.constant 0 : i32
    %c0_i32_1 = arith.constant 0 : i32
    %c0_i32_2 = arith.constant 0 : i32
    return %0, %c0_i32_0, %c0_i32_1 : i32, i32, i32
  }
}

</mosaic_0001>

<llo_original>
// kernel: tpu_custom_call.1
$region0: #{tpu_custom_call.1}
  #allocation0 [shape = 'u32[]', space=smem, size = 0x4, offset = 0x4, fixed_abs, tag = 'smem constant byte address 0x4 - core index']
  #allocation1 [shape = 'u32[144,128]{1,0:T(1,128)}', space=vmem, size = 0x12000, scoped, tag = 'internal scratch']
  #allocation2 [shape = 'f32[2,32]{1,0:T(2,128)}', space=vmem, size = 0x400, scoped, tag = 'scratch operand']
  #allocation3 [shape = 'f32[2,32]{1,0:T(2,128)}', space=vmem, size = 0x400, scoped, tag = 'scratch operand']
  #allocation4 [shape = 'f32[2,32]{1,0:T(2,128)}', space=vmem, size = 0x400, scoped, tag = 'scratch operand']
  #allocation5 [shape = 'f32[2,32]{1,0:T(2,128)}', space=vmem, size = 0x400, scoped, tag = 'scratch operand']
  %s0 = inlined_call_operand.hbm [shape: f32[8,2,128], index: 0, kind: input, shape index: {}]
  %s1 = inlined_call_operand.hbm [shape: f32[8,2,128], index: 1, kind: input, shape index: {}]
  %s2 = inlined_call_operand.hbm [shape: bf16[32,128], index: 2, kind: input, shape index: {}]
  %s3 = inlined_call_operand.hbm [shape: bf16[32,128], index: 3, kind: input, shape index: {}]
  %s4 = inlined_call_operand.hbm [shape: f32[8,2,32], index: 4, kind: output, shape index: {0}]
  %s5 = inlined_call_operand.hbm [shape: f32[8,2,32], index: 5, kind: output, shape index: {1}]
  %6 = xla_tuple %s4, %s5
  %s7 = sld [smem:[#allocation0]]
  $region61: #{tpu_custom_call.1} parent=0
    _
  %s9 = ssub.s32 1, %s7
  %s10 = scalar_select 0, %s9, %s7
  $region1: #{tpu_custom_call.1} parent=0
    #allocation6 [shape = 'u8[8192]{0}', space=vmem, size = 0x2000, scoped, tag = 'input window, operand 0, single buffered']
    #allocation7 [shape = 's32[1]{0}', space=sflag, size = 0x4, scoped, tag = 'scoped memory for tpu_custom_call.1']
    #allocation8 [shape = 's32[1]{0}', space=sflag, size = 0x4, scoped, tag = 'scoped memory for tpu_custom_call.1']
    #allocation9 [shape = 'u8[8192]{0}', space=vmem, size = 0x2000, scoped, tag = 'input window, operand 1, single buffered']
    #allocation10 [shape = 's32[1]{0}', space=sflag, size = 0x4, scoped, tag = 'scoped memory for tpu_custom_call.1']
    #allocation11 [shape = 'u8[8192]{0}', space=vmem, size = 0x2000, scoped, tag = 'input window, operand 2, single buffered']
    #allocation12 [shape = 'u8[8192]{0}', space=vmem, size = 0x2000, scoped, tag = 'input window, operand 3, single buffered']
    #allocation13 [shape = 's32[1]{0}', space=sflag, size = 0x4, scoped, tag = 'scoped memory for tpu_custom_call.1']
    #allocation14 [shape = 'u8[8192]{0}', space=vmem, size = 0x2000, scoped, tag = 'output window, operand 0, single buffered']
    #allocation15 [shape = 'u8[8192]{0}', space=vmem, size = 0x2000, scoped, tag = 'output window, operand 1, single buffered']
    #allocation16 [shape = 's32[1]{0}', space=sflag, size = 0x4, scoped, tag = 'scoped memory for tpu_custom_call.1']
    %11 = vsyncpa [#allocation7], 0
    %12 = vsyncpa [#allocation10], 0
    %13 = vsyncpa [#allocation13], 0
    %14 = vsyncpa [#allocation8], 0
    %15 = vsyncpa [#allocation16], 0
    // Predicated region
    $region2: #{tpu_custom_call.1} parent=1 // pred_check
      _
    $region3: #{tpu_custom_call.1} parent=1 // pred_check_branch
      %17 = sbr.rel (0) target = $region5
    $region4: #{tpu_custom_call.1} parent=1 // pred_region
      %s19 = ssub.s32 256, 256
      %20 = vsyncadd [#allocation7], %s19
      %s21 = sshll.u32 [#allocation6], 4
      %s22 = int_to_ptr.vmem [resolvable:$true] %s21
      %27 = dma.hbm_to_vmem [thread:$0]  %s0, 256, %s22, [#allocation7], 32, 32, 2
    $region5: #{tpu_custom_call.1} parent=1 // pred_fallthru
      _
    // Predicated region
    $region6: #{tpu_custom_call.1} parent=1 // pred_check
      _
    $region7: #{tpu_custom_call.1} parent=1 // pred_check_branch
      %29 = sbr.rel (0) target = $region9
    $region8: #{tpu_custom_call.1} parent=1 // pred_region
      %s30 = ssub.s32 0, 0
      %s31 = smul.u32 8, %s30
      %s33 = ssub.s32 256, 256
      %34 = vsyncadd [#allocation10], %s33
      %s35 = smul.addr %s31, 32
      %s36 = scalar_lea.hbm %s1, %s35
      %s37 = sshll.u32 [#allocation9], 4
      %s38 = int_to_ptr.vmem [resolvable:$true] %s37
      %43 = dma.hbm_to_vmem [thread:$0]  %s36, 256, %s38, [#allocation10], 32, 32, 2
    $region9: #{tpu_custom_call.1} parent=1 // pred_fallthru
      _
    // Predicated region
    $region10: #{tpu_custom_call.1} parent=1 // pred_check
      _
    $region11: #{tpu_custom_call.1} parent=1 // pred_check_branch
      %45 = sbr.rel (0) target = $region13
    $region12: #{tpu_custom_call.1} parent=1 // pred_region
      %s47 = ssub.s32 256, 256
      %48 = vsyncadd [#allocation10], %s47
      %s49 = sshll.u32 [#allocation11], 4
      %s50 = int_to_ptr.vmem [resolvable:$true] %s49
      %55 = dma.hbm_to_vmem [thread:$0]  %s2, 256, %s50, [#allocation10], 64, 64, 4
    $region13: #{tpu_custom_call.1} parent=1 // pred_fallthru
      _
    // Predicated region
    $region14: #{tpu_custom_call.1} parent=1 // pred_check
      _
    $region15: #{tpu_custom_call.1} parent=1 // pred_check_branch
      %57 = sbr.rel (0) target = $region17
    $region16: #{tpu_custom_call.1} parent=1 // pred_region
      %s59 = ssub.s32 256, 256
      %60 = vsyncadd [#allocation13], %s59
      %s61 = sshll.u32 [#allocation12], 4
      %s62 = int_to_ptr.vmem [resolvable:$true] %s61
      %67 = dma.hbm_to_vmem [thread:$0]  %s3, 256, %s62, [#allocation13], 64, 64, 4
    $region17: #{tpu_custom_call.1} parent=1 // pred_fallthru
      _
    // Predicated region
    $region18: #{tpu_custom_call.1} parent=1 // pred_check
      _
    $region19: #{tpu_custom_call.1} parent=1 // pred_check_branch
      %69 = sbr.rel (0) target = $region21
    $region20: #{tpu_custom_call.1} parent=1 // pred_region
      %70 = dma.done [#allocation7], 256
    $region21: #{tpu_custom_call.1} parent=1 // pred_fallthru
      _
    // Predicated region
    $region22: #{tpu_custom_call.1} parent=1 // pred_check
      _
    $region23: #{tpu_custom_call.1} parent=1 // pred_check_branch
      %72 = sbr.rel (0) target = $region25
    $region24: #{tpu_custom_call.1} parent=1 // pred_region
      %73 = dma.done [#allocation10], 256
    $region25: #{tpu_custom_call.1} parent=1 // pred_fallthru
      _
    // Predicated region
    $region26: #{tpu_custom_call.1} parent=1 // pred_check
      _
    $region27: #{tpu_custom_call.1} parent=1 // pred_check_branch
      %75 = sbr.rel (0) target = $region29
    $region28: #{tpu_custom_call.1} parent=1 // pred_region
      %76 = dma.done [#allocation10], 256
    $region29: #{tpu_custom_call.1} parent=1 // pred_fallthru
      _
    // Predicated region
    $region30: #{tpu_custom_call.1} parent=1 // pred_check
      _
    $region31: #{tpu_custom_call.1} parent=1 // pred_check_branch
      %78 = sbr.rel (0) target = $region33
    $region32: #{tpu_custom_call.1} parent=1 // pred_region
      %79 = dma.done [#allocation13], 256
    $region33: #{tpu_custom_call.1} parent=1 // pred_fallthru
      _
    %s80 = ssub.s32 0, 0
    %s81 = smul.u32 8, %s80
    %s82 = ssub.s32 0, 0
    %s83 = smul.u32 8, %s82
    %p85 = scmp.eq.s32.totalorder 0, 0
    // Predicated region
    $region34: #{tpu_custom_call.1} parent=1 // pred_check
      %p86 = pneg %p85
    $region35: #{tpu_custom_call.1} parent=1 // pred_check_branch
      %88 = sbr.rel (%p86) target = $region37
    $region36: #{tpu_custom_call.1} parent=1 // pred_region
      %vm89 = vcmask 254976
      %90 = vst.msk [vmem:[#allocation2] sm:$0x3] %vm89, 0.0
      %91 = vst.msk [vmem:[#allocation3] sm:$0x3] %vm89, 0.0
      %92 = vst.msk [vmem:[#allocation4] sm:$0x3] %vm89, 0.0
      %93 = vst.msk [vmem:[#allocation5] sm:$0x3] %vm89, 0.0
    $region37: #{tpu_custom_call.1} parent=1 // pred_fallthru
      _
    %v94 = vld [vmem:[#allocation11] sm:$0xf]
    %v95 = vld [vmem:[#allocation11 + $0x4] sm:$0xf]
    %v96 = vld [vmem:[#allocation11 + $0x8] sm:$0xf]
    %v97 = vld [vmem:[#allocation11 + $0xc] sm:$0xf]
    %v98 = vld [vmem:[#allocation12] sm:$0xf]
    %v99 = vld [vmem:[#allocation12 + $0x4] sm:$0xf]
    %v100 = vld [vmem:[#allocation12 + $0x8] sm:$0xf]
    %v101 = vld [vmem:[#allocation12 + $0xc] sm:$0xf]
    %v102 = vld [vmem:[#allocation2] sm:$0x3]
    %v103 = vld [vmem:[#allocation3] sm:$0x3]
    %v104 = vld [vmem:[#allocation4] sm:$0x3]
    %v105 = vld [vmem:[#allocation5] sm:$0x3]
    loop: start=0, step=1, limit=8
    $region38: #{tpu_custom_call.1} parent=1 // loop_pre_header
      _
    $region39: #{tpu_custom_call.1} parent=1 // loop_header
      %s107 = sphi 0, %s111
      %p108 = scmp.ge.s32.totalorder %s107, 8
      %v112 = vphi %v102, %v207
      %v113 = vphi %v103, %v309
      %v114 = vphi %v104, %v303
      %v115 = vphi %v105, %v313
    $region40: #{tpu_custom_call.1} parent=1 // loop_header_branch
      %110 = sbr.rel (%p108) target = $region44
    $region41: #{tpu_custom_call.1} parent=1 // loop_body
      %s116 = smul.u32 %s107, 2
      %s117 = scalar_lea.vmem [#allocation6], %s116
      %v118 = vld [vmem:[%s117] sm:$0x3]
      %v119 = vpack.c.bf16 %v112, %v112
      %v124 = vunpack.c.l.b16 %v94
      %v125 = vunpack.c.l.b16 %v95
      %v126 = vunpack.c.l.b16 %v96
      %v127 = vunpack.c.l.b16 %v97
      %v128 = vpack.c.b16 %v125, %v124
      %v129 = vpack.c.b16 %v127, %v126
      %vm132 = vcmask 261120
      %v134 = vsel %vm132, %v119, 0
      %136 = vmatprep.subr.bf16.mxu0 0
      %137 = vmatpush1.bf16.msra.mxu0 0
      %138 = vmatprep.subr.bf16.mxu0 0
      %139 = vmatpush1.bf16.msra.mxu0 0
      %140 = vmatprep.subr.bf16.mxu0 0
      %141 = vmatpush1.bf16.msra.mxu0 0
      %142 = vmatprep.subr.bf16.mxu0 0
      %143 = vmatpush1.bf16.msra.mxu0 0
      %144 = vmatprep.subr.bf16.mxu0 0
      %145 = vmatpush1.bf16.msra.mxu0 0
      %146 = vmatprep.subr.bf16.mxu0 0
      %147 = vmatpush1.bf16.msra.mxu0 0
      %148 = vmatprep.subr.bf16.mxu0 0
      %149 = vmatpush1.bf16.msra.mxu0 %v129
      %150 = vmatprep.subr.bf16.mxu0 0
      %151 = vmatpush1.bf16.msra.mxu0 %v128
      %152 = vmatprep.subr.bf16.mxu0 0
      %153 = vmatpush2.bf16.msra.mxu0 0
      %154 = vmatprep.subr.bf16.mxu0 0
      %155 = vmatpush2.bf16.msra.mxu0 0
      %156 = vmatprep.subr.bf16.mxu0 0
      %157 = vmatpush2.bf16.msra.mxu0 0
      %158 = vmatprep.subr.bf16.mxu0 0
      %159 = vmatpush2.bf16.msra.mxu0 0
      %160 = vmatprep.subr.bf16.mxu0 0
      %161 = vmatpush2.bf16.msra.mxu0 0
      %162 = vmatprep.subr.bf16.mxu0 0
      %163 = vmatpush2.bf16.msra.mxu0 0
      %164 = vmatprep.subr.bf16.mxu0 0
      %165 = vmatpush2.bf16.msra.mxu0 0
      %166 = vmatprep.subr.bf16.mxu0 0
      %167 = vmatpush2.bf16.msra.mxu0 0
      %168 = vmatprep.mubr.bf16.mxu0 0
      %169 = vmatmul.mubr.bf16.gmra.mxu0 %v134
      %v170 = vpop.f32.mrf.mxu0
      %v171 = vadd.f32 0.0, %v170
      %v172 = vpop.f32.mrf.mxu0
      %v173 = vpop.f32.mrf.mxu0
      %v174 = vpop.f32.mrf.mxu0
      %175 = vdwg.mxu0
      %v176 = vadd.f32 %v118, %v171
      %v177 = vxor.u32 %v176, 2147483648
      %v178 = vmul.f32 %v177, 1.442695
      %v179 = vpow.pop %v178
      %v180 = vadd.f32 %v179, 1.0
      %v181 = vrcp.pop %v180
      %v182 = vmul.f32 1.0, %v181
      %v183 = vtanh.pop %v176
      %185 = vrot.lane.b32.xlu0 %v113, 32
      %v186 = vpop.permute.xlu0 %185
      %v188 = vmul.f32 %v182, %v186
      %190 = vrot.lane.b32.xlu0 %v183, 64
      %v191 = vpop.permute.xlu0 %190
      %v193 = vmul.f32 %v182, %v191
      %195 = vrot.lane.b32.xlu0 %v193, 32
      %v196 = vpop.permute.xlu0 %195
      %v198 = vadd.f32 %v188, %v196
      %v199 = vtanh.pop %v198
      %201 = vrot.lane.b32.xlu0 %v199, 64
      %v202 = vpop.permute.xlu0 %201
      %v204 = vmul.f32 %v182, %v202
      %206 = vrot.lane.b32.xlu0 %v204, 32
      %v207 = vpop.permute.xlu0 %206
      %s209 = scalar_lea.vmem [#allocation14], %s116
      %vm210 = vcmask 254976
      %211 = vst.msk [vmem:[%s209] sm:$0x3] %vm210, %v207
      %s212 = ssub.s32 7, %s107
      %s213 = smul.u32 %s212, 2
      %s214 = scalar_lea.vmem [#allocation9], %s213
      %v215 = vld [vmem:[%s214] sm:$0x3]
      %v216 = vpack.c.bf16 %v114, %v114
      %v221 = vunpack.c.l.b16 %v98
      %v222 = vunpack.c.l.b16 %v99
      %v223 = vunpack.c.l.b16 %v100
      %v224 = vunpack.c.l.b16 %v101
      %v225 = vpack.c.b16 %v222, %v221
      %v226 = vpack.c.b16 %v224, %v223
      %v230 = vsel %vm132, %v216, 0
      %232 = vmatprep.subr.bf16.mxu0 0
      %233 = vmatpush1.bf16.msra.mxu0 0
      %234 = vmatprep.subr.bf16.mxu0 0
      %235 = vmatpush1.bf16.msra.mxu0 0
      %236 = vmatprep.subr.bf16.mxu0 0
      %237 = vmatpush1.bf16.msra.mxu0 0
      %238 = vmatprep.subr.bf16.mxu0 0
      %239 = vmatpush1.bf16.msra.mxu0 0
      %240 = vmatprep.subr.bf16.mxu0 0
      %241 = vmatpush1.bf16.msra.mxu0 0
      %242 = vmatprep.subr.bf16.mxu0 0
      %243 = vmatpush1.bf16.msra.mxu0 0
      %244 = vmatprep.subr.bf16.mxu0 0
      %245 = vmatpush1.bf16.msra.mxu0 %v226
      %246 = vmatprep.subr.bf16.mxu0 0
      %247 = vmatpush1.bf16.msra.mxu0 %v225
      %248 = vmatprep.subr.bf16.mxu0 0
      %249 = vmatpush2.bf16.msra.mxu0 0
      %250 = vmatprep.subr.bf16.mxu0 0
      %251 = vmatpush2.bf16.msra.mxu0 0
      %252 = vmatprep.subr.bf16.mxu0 0
      %253 = vmatpush2.bf16.msra.mxu0 0
      %254 = vmatprep.subr.bf16.mxu0 0
      %255 = vmatpush2.bf16.msra.mxu0 0
      %256 = vmatprep.subr.bf16.mxu0 0
      %257 = vmatpush2.bf16.msra.mxu0 0
      %258 = vmatprep.subr.bf16.mxu0 0
      %259 = vmatpush2.bf16.msra.mxu0 0
      %260 = vmatprep.subr.bf16.mxu0 0
      %261 = vmatpush2.bf16.msra.mxu0 0
      %262 = vmatprep.subr.bf16.mxu0 0
      %263 = vmatpush2.bf16.msra.mxu0 0
      %264 = vmatprep.mubr.bf16.mxu0 0
      %265 = vmatmul.mubr.bf16.gmra.mxu0 %v230
      %v266 = vpop.f32.mrf.mxu0
      %v267 = vadd.f32 0.0, %v266
      %v268 = vpop.f32.mrf.mxu0
      %v269 = vpop.f32.mrf.mxu0
      %v270 = vpop.f32.mrf.mxu0
      %271 = vdwg.mxu0
      %v272 = vadd.f32 %v215, %v267
      %v273 = vxor.u32 %v272, 2147483648
      %v274 = vmul.f32 %v273, 1.442695
      %v275 = vpow.pop %v274
      %v276 = vadd.f32 %v275, 1.0
      %v277 = vrcp.pop %v276
      %v278 = vmul.f32 1.0, %v277
      %v279 = vtanh.pop %v272
      %281 = vrot.lane.b32.xlu0 %v115, 32
      %v282 = vpop.permute.xlu0 %281
      %v284 = vmul.f32 %v278, %v282
      %286 = vrot.lane.b32.xlu0 %v279, 64
      %v287 = vpop.permute.xlu0 %286
      %v289 = vmul.f32 %v278, %v287
      %291 = vrot.lane.b32.xlu0 %v289, 32
      %v292 = vpop.permute.xlu0 %291
      %v294 = vadd.f32 %v284, %v292
      %v295 = vtanh.pop %v294
      %297 = vrot.lane.b32.xlu0 %v295, 64
      %v298 = vpop.permute.xlu0 %297
      %v300 = vmul.f32 %v278, %v298
      %302 = vrot.lane.b32.xlu0 %v300, 32
      %v303 = vpop.permute.xlu0 %302
      %s305 = scalar_lea.vmem [#allocation15], %s213
      %306 = vst.msk [vmem:[%s305] sm:$0x3] %vm210, %v303
      %308 = vrot.lane.b32.xlu0 %v198, 96
      %v309 = vpop.permute.xlu0 %308
      %312 = vrot.lane.b32.xlu0 %v294, 96
      %v313 = vpop.permute.xlu0 %312
    $region42: #{tpu_custom_call.1} parent=1 // loop_footer
      %s111 = sadd.s32 1, %s107
    $region43: #{tpu_custom_call.1} parent=1 // loop_footer_branch
      %106 = sbr.rel target = $region39
    $region44: #{tpu_custom_call.1} parent=1 // loop_exit
      _
    %vm315 = vcmask 254976
    %316 = vst.msk [vmem:[#allocation2] sm:$0x3] %vm315, %v112
    %317 = vst.msk [vmem:[#allocation3] sm:$0x3] %vm315, %v113
    %318 = vst.msk [vmem:[#allocation4] sm:$0x3] %vm315, %v114
    %319 = vst.msk [vmem:[#allocation5] sm:$0x3] %vm315, %v115
    // Predicated region
    $region45: #{tpu_custom_call.1} parent=1 // pred_check
      _
    $region46: #{tpu_custom_call.1} parent=1 // pred_check_branch
      %321 = sbr.rel (0) target = $region48
    $region47: #{tpu_custom_call.1} parent=1 // pred_region
      %s323 = ssub.s32 256, 256
      %324 = vsyncadd [#allocation8], %s323
      %s325 = sshll.u32 [#allocation14], 4
      %s326 = int_to_ptr.vmem [resolvable:$true] %s325
      %331 = dma.vmem_to_hbm [thread:$0]  %s326, 256, %s4, [#allocation8], 32, 32, 2
    $region48: #{tpu_custom_call.1} parent=1 // pred_fallthru
      _
    // Predicated region
    $region49: #{tpu_custom_call.1} parent=1 // pred_check
      _
    $region50: #{tpu_custom_call.1} parent=1 // pred_check_branch
      %333 = sbr.rel (0) target = $region52
    $region51: #{tpu_custom_call.1} parent=1 // pred_region
      %s334 = ssub.s32 0, 0
      %s335 = smul.u32 8, %s334
      %s337 = ssub.s32 256, 256
      %338 = vsyncadd [#allocation16], %s337
      %s339 = smul.addr %s335, 32
      %s340 = scalar_lea.hbm %s5, %s339
      %s341 = sshll.u32 [#allocation15], 4
      %s342 = int_to_ptr.vmem [resolvable:$true] %s341
      %347 = dma.vmem_to_hbm [thread:$0]  %s342, 256, %s340, [#allocation16], 32, 32, 2
    $region52: #{tpu_custom_call.1} parent=1 // pred_fallthru
      _
    // Predicated region
    $region53: #{tpu_custom_call.1} parent=1 // pred_check
      _
    $region54: #{tpu_custom_call.1} parent=1 // pred_check_branch
      %349 = sbr.rel (0) target = $region56
    $region55: #{tpu_custom_call.1} parent=1 // pred_region
      %350 = dma.done [#allocation8], 256
    $region56: #{tpu_custom_call.1} parent=1 // pred_fallthru
      _
    // Predicated region
    $region57: #{tpu_custom_call.1} parent=1 // pred_check
      _
    $region58: #{tpu_custom_call.1} parent=1 // pred_check_branch
      %352 = sbr.rel (0) target = $region60
    $region59: #{tpu_custom_call.1} parent=1 // pred_region
      %353 = dma.done [#allocation16], 256
    $region60: #{tpu_custom_call.1} parent=1 // pred_fallthru
      _
    %354 = vsyncpa [#allocation7], 1
    %355 = vsyncpa [#allocation10], 1
    %356 = vsyncpa [#allocation13], 1
    %357 = vsyncpa [#allocation8], 1
    %358 = vsyncpa [#allocation16], 1

</llo_original>
